<compile_context>
chip_gen: v6e
topology: v6e:2x2x1
jax: 0.10.0
libtpu: 0.0.40
codegen_flags: <defaults>
</compile_context>

<pallas_src>
import functools

import jax
import jax.numpy as jnp
from jax.experimental import pallas as pl
from jax.experimental.pallas import tpu as pltpu


def _round_up(a: int, b: int) -> int:
    return ((a + b - 1) // b) * b


def _cdiv(a: int, b: int) -> int:
    return (a + b - 1) // b


def _balanced_tile(dim: int, hint: int, align: int):
    """Tile ~hint that evenly partitions the padded dim and minimizes padding."""
    hint = max(int(hint), align)
    n_tiles = max(1, _cdiv(dim, hint))
    tile = _round_up(_cdiv(dim, n_tiles), align)
    return tile, tile * n_tiles


def _vmem_capacity_bytes() -> int:
    try:
        return int(pltpu.get_tpu_info().vmem_capacity_bytes)
    except Exception:
        return 64 << 20  # conservative default (v7x per-core VMEM)


# ---------------------------------------------------------------------------
# Kernels
# ---------------------------------------------------------------------------
def _linear_sigmoid_small_kernel(x_ref, w_ref, b_ref, o_ref):
    # Whole problem in one VMEM block: single MXU matmul + bias (VPU) + sigmoid (EUP).
    acc = jnp.dot(
        x_ref[...], w_ref[...],
        preferred_element_type=jnp.float32,
        precision=jax.lax.Precision.HIGHEST,
    )
    o_ref[...] = jax.nn.sigmoid(acc + b_ref[...])


def _linear_sigmoid_tiled_kernel(x_ref, w_ref, b_ref, o_ref):
    # x: [tm, tk], w: [tk, tn], b: [1, tn], o: [tm, tn] (f32, resident across k).
    k = pl.program_id(2)

    @pl.when(k == 0)
    def _():
        o_ref[...] = jnp.zeros_like(o_ref)

    # Accumulate directly into the f32 output block (no scratch accumulator).
    o_ref[...] += jnp.dot(
        x_ref[...], w_ref[...],
        preferred_element_type=jnp.float32,
        precision=jax.lax.Precision.HIGHEST,
    )

    @pl.when(k == pl.num_programs(2) - 1)
    def _():
        o_ref[...] = jax.nn.sigmoid(o_ref[...] + b_ref[...])


# ---------------------------------------------------------------------------
# Wrappers
# ---------------------------------------------------------------------------
def prepare_params(weight, bias):
    """One-time parameter layout prep (hoisted out of the per-call path).

    weight: [dim_out, dim_in] (PyTorch nn.Linear convention) -> [dim_in, dim_out] f32
    bias:   [dim_out] -> [1, dim_out] f32
    """
    w_t = jnp.asarray(weight, jnp.float32).T
    b2d = jnp.asarray(bias, jnp.float32).reshape(1, -1)
    return w_t, b2d


@functools.partial(
    jax.jit, static_argnames=("tm_hint", "tn_hint", "tk_hint", "force_tiled")
)
def linearlayer_att_forward(x, w_t, b2d, *, tm_hint=None, tn_hint=None,
                            tk_hint=None, force_tiled=False):
    """Pallas equivalent of: sigmoid(x.float() @ weight.T + bias).

    x:   [M, K]; w_t: [K, N] (pre-transposed by prepare_params); b2d: [1, N].
    Returns [M, N] float32.
    """
    # Module spec casts to float32.
    x = x.astype(jnp.float32)
    w_t = w_t.astype(jnp.float32)
    b2d = b2d.astype(jnp.float32)

    M, K = x.shape
    K2, N = w_t.shape
    assert K == K2 and b2d.shape == (1, N)

    # ---------- tiny-shape fast path: no padding, no slicing, grid-less call ----------
    total_bytes = 4 * (M * K + K * N + M * N + N)
    if not force_tiled and total_bytes <= (2 << 20):
        # TODO(synk): at truly tiny production shapes this op should ultimately be
        # fused into the surrounding kernel rather than launched standalone.
        return pl.pallas_call(
            _linear_sigmoid_small_kernel,
            out_shape=jax.ShapeDtypeStruct((M, N), jnp.float32),
        )(x, w_t, b2d)

    # ---------- tiled path: 3-D grid (M tiles, N tiles, K reduction) ----------
    vmem_cap = _vmem_capacity_bytes()
    small_vmem = vmem_cap <= (64 << 20)  # v7x
    if tm_hint is None:
        tm_hint = 256 if small_vmem else 512
    if tn_hint is None:
        tn_hint = 256 if small_vmem else 512

    tm, m_pad = _balanced_tile(M, tm_hint, 8)      # f32 sublane multiple
    tn, n_pad = _balanced_tile(N, tn_hint, 128)    # lane-dense output

    # Make tk as large as the VMEM budget allows (fewer accumulator revisits).
    budget = min(int(vmem_cap * 0.4), 48 << 20)
    if tk_hint is None:
        avail = budget - 4 * (2 * tm * tn + 2 * tn)   # output block + bias buffers
        tk_hint = max(128, (avail // (8 * (tm + tn))) // 128 * 128)
    tk, k_pad = _balanced_tile(K, tk_hint, 128)

    # Pad only when actually needed (zero padding keeps the math exact).
    if (m_pad, k_pad) != (M, K):
        x = jnp.pad(x, ((0, m_pad - M), (0, k_pad - K)))
    if (k_pad, n_pad) != (K, N):
        # TODO(synk): hoist this weight pad into prepare_params at parameter-load time
        # so the weight is not re-padded (extra HBM pass) on every forward call.
        w_t = jnp.pad(w_t, ((0, k_pad - K), (0, n_pad - N)))
    if n_pad != N:
        b2d = jnp.pad(b2d, ((0, 0), (0, n_pad - N)))

    grid = (m_pad // tm, n_pad // tn, k_pad // tk)

    out = pl.pallas_call(
        _linear_sigmoid_tiled_kernel,
        out_shape=jax.ShapeDtypeStruct((m_pad, n_pad), jnp.float32),
        grid_spec=pltpu.PrefetchScalarGridSpec(
            num_scalar_prefetch=0,
            grid=grid,
            in_specs=[
                pl.BlockSpec((tm, tk), lambda i, j, k: (i, k)),   # x tile
                pl.BlockSpec((tk, tn), lambda i, j, k: (k, j)),   # weight tile
                pl.BlockSpec((1, tn), lambda i, j, k: (0, j)),    # bias tile
            ],
            out_specs=pl.BlockSpec((tm, tn), lambda i, j, k: (i, j)),
        ),
        compiler_params=pltpu.CompilerParams(
            dimension_semantics=("parallel", "parallel", "arbitrary"),
            vmem_limit_bytes=min(int(vmem_cap * 0.75), 100 << 20),
        ),
    )(x, w_t, b2d)

    if (m_pad, n_pad) != (M, N):
        out = out[:M, :N]
    return out


def _reference_forward(x, weight, bias):
    y = jnp.dot(
        x.astype(jnp.float32), weight.T.astype(jnp.float32),
        precision=jax.lax.Precision.HIGHEST,
    ) + bias
    return jax.nn.sigmoid(y)


if __name__ == "__main__":
    key = jax.random.PRNGKey(0)
    k_x, k_w, k_b, k_x2, k_w2, k_b2 = jax.random.split(key, 6)

    # ---- 1) production-like tiny shape -> fast path (no padding, single block) ----
    batch, dim_in, dim_out = 8, 32, 16
    bound = 1.0 / (dim_in ** 0.5)
    weight = jax.random.uniform(k_w, (dim_out, dim_in), jnp.float32, -bound, bound)
    bias = jax.random.uniform(k_b, (dim_out,), jnp.float32, -bound, bound)
    x = jax.random.normal(k_x, (batch, dim_in), jnp.float32)

    w_t, b2d = prepare_params(weight, bias)
    out = jax.block_until_ready(linearlayer_att_forward(x, w_t, b2d))
    ref = _reference_forward(x, weight, bias)
    assert out.shape == (batch, dim_out), out.shape
    assert jnp.allclose(out, ref, atol=1e-5, rtol=1e-5), float(jnp.max(jnp.abs(out - ref)))

    # ---- 2) exercise the tiled path: 3-D grid, padding, in-place K accumulation ----
    M2, K2, N2 = 72, 320, 192
    bound2 = 1.0 / (K2 ** 0.5)
    weight2 = jax.random.uniform(k_w2, (N2, K2), jnp.float32, -bound2, bound2)
    bias2 = jax.random.uniform(k_b2, (N2,), jnp.float32, -bound2, bound2)
    x2 = jax.random.normal(k_x2, (M2, K2), jnp.float32)

    w_t2, b2d2 = prepare_params(weight2, bias2)
    out2 = jax.block_until_ready(
        linearlayer_att_forward(
            x2, w_t2, b2d2, tm_hint=64, tn_hint=128, tk_hint=128, force_tiled=True
        )
    )
    ref2 = _reference_forward(x2, weight2, bias2)
    assert out2.shape == (M2, N2), out2.shape
    assert jnp.allclose(out2, ref2, atol=1e-5, rtol=1e-5), float(jnp.max(jnp.abs(out2 - ref2)))

    print("KERNEL_OK")
</pallas_src>

<mosaic_0001>
module attributes {stable_mosaic.version = 11 : i64} {
  func.func @_linear_sigmoid_small_kernel(%arg0: memref<8x32xf32, #tpu.memory_space<vmem>>, %arg1: memref<32x16xf32, #tpu.memory_space<vmem>>, %arg2: memref<1x16xf32, #tpu.memory_space<vmem>>, %arg3: memref<8x16xf32, #tpu.memory_space<vmem>>) attributes {dimension_semantics = [], scalar_prefetch = 0 : i64, scratch_operands = 0 : i64, tpu.core_type = #tpu.core_type<tc>} {
    %c0 = arith.constant 0 : index
    %c0_0 = arith.constant 0 : index
    %0 = vector.load %arg0[%c0, %c0_0] : memref<8x32xf32, #tpu.memory_space<vmem>>, vector<8x32xf32>
    %c0_1 = arith.constant 0 : index
    %c0_2 = arith.constant 0 : index
    %1 = vector.load %arg1[%c0_1, %c0_2] : memref<32x16xf32, #tpu.memory_space<vmem>>, vector<32x16xf32>
    %cst = arith.constant dense<0.000000e+00> : vector<8x16xf32>
    %2 = tpu.matmul %0, %1, %cst {dimension_numbers = #tpu.dot_dimension_numbers<[1], [0], [0], [1], [0, 0, 1, 1], [], []>, precision = #tpu.contract_precision<fp32>} : vector<8x32xf32>, vector<32x16xf32>, vector<8x16xf32> -> vector<8x16xf32>
    %c0_3 = arith.constant 0 : index
    %c0_4 = arith.constant 0 : index
    %3 = vector.load %arg2[%c0_3, %c0_4] : memref<1x16xf32, #tpu.memory_space<vmem>>, vector<1x16xf32>
    %4 = vector.broadcast %3 : vector<1x16xf32> to vector<8x16xf32>
    %5 = arith.addf %2, %4 : vector<8x16xf32>
    %6 = arith.negf %5 : vector<8x16xf32>
    %7 = math.exp %6 : vector<8x16xf32>
    %cst_5 = arith.constant 1.000000e+00 : f32
    %8 = vector.broadcast %cst_5 : f32 to vector<8x16xf32>
    %9 = arith.addf %8, %7 : vector<8x16xf32>
    %10 = arith.divf %8, %9 : vector<8x16xf32>
    %c0_6 = arith.constant 0 : index
    %c0_7 = arith.constant 0 : index
    %11 = vector.load %arg3[%c0_6, %c0_7] : memref<8x16xf32, #tpu.memory_space<vmem>>, vector<8x16xf32>
    tpu.vector_store %arg3[%c0_6, %c0_7], %10 {strides = array<i32>} : memref<8x16xf32, #tpu.memory_space<vmem>>, vector<8x16xf32>,
    return
  }
}

</mosaic_0001>

<llo_original>
// kernel: linearlayer_att_forward.1
$region0: #{linearlayer_att_forward.1}
  #allocation0 [shape = 'u32[]', space=smem, size = 0x4, offset = 0x4, fixed_abs, tag = 'smem constant byte address 0x4 - core index']
  #allocation1 [shape = 'u32[144,128]{1,0:T(1,128)}', space=vmem, size = 0x12000, scoped, tag = 'internal scratch']
  %s0 = inlined_call_operand.vmem [shape: f32[8,32], index: 0, kind: input, shape index: {}]
  %s1 = inlined_call_operand.vmem [shape: f32[32,16], index: 1, kind: input, shape index: {}]
  %s2 = inlined_call_operand.vmem [shape: f32[1,16], index: 2, kind: input, shape index: {}]
  %s3 = inlined_call_operand.hbm [shape: f32[8,16], index: 3, kind: output, shape index: {}]
  %s4 = sld [smem:[#allocation0]]
  $region22: #{linearlayer_att_forward.1} parent=0
    _
  %s6 = ssub.s32 1, %s4
  %s7 = scalar_select 0, %s6, %s4
  $region1: #{linearlayer_att_forward.1} parent=0
    #allocation2 [shape = 'u8[4096]{0}', space=vmem, size = 0x1000, scoped, tag = 'output window, operand 0, single buffered']
    #allocation3 [shape = 's32[1]{0}', space=sflag, size = 0x4, scoped, tag = 'scoped memory for linearlayer_att_forward.1']
    %8 = vsyncpa [#allocation3], 0
    // Predicated region
    $region2: #{linearlayer_att_forward.1} parent=1 // pred_check
      _
    $region3: #{linearlayer_att_forward.1} parent=1 // pred_check_branch
      %10 = sbr.rel (0) target = $region5
    $region4: #{linearlayer_att_forward.1} parent=1 // pred_region
      _
    $region5: #{linearlayer_att_forward.1} parent=1 // pred_fallthru
      _
    // Predicated region
    $region6: #{linearlayer_att_forward.1} parent=1 // pred_check
      _
    $region7: #{linearlayer_att_forward.1} parent=1 // pred_check_branch
      %12 = sbr.rel (0) target = $region9
    $region8: #{linearlayer_att_forward.1} parent=1 // pred_region
      _
    $region9: #{linearlayer_att_forward.1} parent=1 // pred_fallthru
      _
    // Predicated region
    $region10: #{linearlayer_att_forward.1} parent=1 // pred_check
      _
    $region11: #{linearlayer_att_forward.1} parent=1 // pred_check_branch
      %14 = sbr.rel (0) target = $region13
    $region12: #{linearlayer_att_forward.1} parent=1 // pred_region
      _
    $region13: #{linearlayer_att_forward.1} parent=1 // pred_fallthru
      _
    %v15 = vld [vmem:[%s0] sm:$0xff]
    %v16 = vld [vmem:[%s1] sm:$0xff]
    %v17 = vld [vmem:[%s1 + $0x8] sm:$0xff]
    %v18 = vld [vmem:[%s1 + $0x10] sm:$0xff]
    %v19 = vld [vmem:[%s1 + $0x18] sm:$0xff]
    %v20 = vld [vmem:[%s2] sm:$0x1]
    %v22 = vlaneseq
    %v23 = vshrl.u32 %v22, 7
    %v24 = vsub.s32 0, %v23
    %v25 = vrot.slane %v20, %v24
    %vm27 = vcmask 261120
    %v29 = vsel %vm27, %v15, 0
    %31 = vmatprep.subr.mxu0 0.0
    %32 = vmatpush1.msra.mxu0 0.0
    %33 = vmatprep.subr.mxu0 0.0
    %34 = vmatpush1.msra.mxu0 0.0
    %35 = vmatprep.subr.mxu0 0.0
    %36 = vmatpush1.msra.mxu0 0.0
    %37 = vmatprep.subr.mxu0 0.0
    %38 = vmatpush1.msra.mxu0 0.0
    %39 = vmatprep.subr.mxu0 0.0
    %40 = vmatpush1.msra.mxu0 0.0
    %41 = vmatprep.subr.mxu0 0.0
    %42 = vmatpush1.msra.mxu0 0.0
    %43 = vmatprep.subr.mxu0 0.0
    %44 = vmatpush1.msra.mxu0 0.0
    %45 = vmatprep.subr.mxu0 0.0
    %46 = vmatpush1.msra.mxu0 0.0
    %47 = vmatprep.subr.mxu0 0.0
    %48 = vmatpush1.msra.mxu0 0.0
    %49 = vmatprep.subr.mxu0 0.0
    %50 = vmatpush1.msra.mxu0 0.0
    %51 = vmatprep.subr.mxu0 0.0
    %52 = vmatpush1.msra.mxu0 0.0
    %53 = vmatprep.subr.mxu0 0.0
    %54 = vmatpush1.msra.mxu0 0.0
    %55 = vmatprep.subr.mxu0 0.0
    %v56 = vand.u32 %v19, 4294901760
    %57 = vmatpush1.msra.mxu0 %v56
    %58 = vmatprep.subr.mxu0 0.0
    %v59 = vand.u32 %v18, 4294901760
    %60 = vmatpush1.msra.mxu0 %v59
    %61 = vmatprep.subr.mxu0 0.0
    %v62 = vand.u32 %v17, 4294901760
    %63 = vmatpush1.msra.mxu0 %v62
    %64 = vmatprep.subr.mxu0 0.0
    %v65 = vand.u32 %v16, 4294901760
    %66 = vmatpush1.msra.mxu0 %v65
    %67 = vmatprep.subr.mxu0 0.0
    %68 = vmatpush2.msra.mxu0 0.0
    %69 = vmatprep.subr.mxu0 0.0
    %70 = vmatpush2.msra.mxu0 0.0
    %71 = vmatprep.subr.mxu0 0.0
    %72 = vmatpush2.msra.mxu0 0.0
    %73 = vmatprep.subr.mxu0 0.0
    %74 = vmatpush2.msra.mxu0 0.0
    %75 = vmatprep.subr.mxu0 0.0
    %76 = vmatpush2.msra.mxu0 0.0
    %77 = vmatprep.subr.mxu0 0.0
    %78 = vmatpush2.msra.mxu0 0.0
    %79 = vmatprep.subr.mxu0 0.0
    %80 = vmatpush2.msra.mxu0 0.0
    %81 = vmatprep.subr.mxu0 0.0
    %82 = vmatpush2.msra.mxu0 0.0
    %83 = vmatprep.subr.mxu0 0.0
    %84 = vmatpush2.msra.mxu0 0.0
    %85 = vmatprep.subr.mxu0 0.0
    %86 = vmatpush2.msra.mxu0 0.0
    %87 = vmatprep.subr.mxu0 0.0
    %88 = vmatpush2.msra.mxu0 0.0
    %89 = vmatprep.subr.mxu0 0.0
    %90 = vmatpush2.msra.mxu0 0.0
    %91 = vmatprep.subr.mxu0 0.0
    %92 = vmatpush2.msra.mxu0 0.0
    %93 = vmatprep.subr.mxu0 0.0
    %94 = vmatpush2.msra.mxu0 0.0
    %95 = vmatprep.subr.mxu0 0.0
    %96 = vmatpush2.msra.mxu0 0.0
    %97 = vmatprep.subr.mxu0 0.0
    %98 = vmatpush2.msra.mxu0 0.0
    %99 = vmatprep.mubr.f32.mxu0 0.0
    %v100 = vand.u32 %v29, 4294901760
    %v101 = vsub.f32 %v29, %v100
    %v102 = vand.u32 %v101, 4294901760
    %v103 = vsub.f32 %v101, %v102
    %v104 = vand.u32 %v103, 4294901760
    %105 = vmatmul.mubr.f32.gmra.mxu0 %v104
    %v106 = vpop.f32.mrf.mxu0
    %v107 = vadd.f32 %v25, %v106
    %v108 = vpop.f32.mrf.mxu0
    %109 = vdwg.mxu0
    %110 = vmatprep.subr.mxu0 0.0
    %111 = vmatpush1.msra.mxu0 0.0
    %112 = vmatprep.subr.mxu0 0.0
    %113 = vmatpush1.msra.mxu0 0.0
    %114 = vmatprep.subr.mxu0 0.0
    %115 = vmatpush1.msra.mxu0 0.0
    %116 = vmatprep.subr.mxu0 0.0
    %117 = vmatpush1.msra.mxu0 0.0
    %118 = vmatprep.subr.mxu0 0.0
    %119 = vmatpush1.msra.mxu0 0.0
    %120 = vmatprep.subr.mxu0 0.0
    %121 = vmatpush1.msra.mxu0 0.0
    %122 = vmatprep.subr.mxu0 0.0
    %123 = vmatpush1.msra.mxu0 0.0
    %124 = vmatprep.subr.mxu0 0.0
    %125 = vmatpush1.msra.mxu0 0.0
    %126 = vmatprep.subr.mxu0 0.0
    %127 = vmatpush1.msra.mxu0 0.0
    %128 = vmatprep.subr.mxu0 0.0
    %129 = vmatpush1.msra.mxu0 0.0
    %130 = vmatprep.subr.mxu0 0.0
    %131 = vmatpush1.msra.mxu0 0.0
    %132 = vmatprep.subr.mxu0 0.0
    %133 = vmatpush1.msra.mxu0 0.0
    %134 = vmatprep.subr.mxu0 0.0
    %v135 = vand.u32 %v19, 4294901760
    %v136 = vsub.f32 %v19, %v135
    %v137 = vand.u32 %v136, 4294901760
    %v138 = vsub.f32 %v136, %v137
    %v139 = vand.u32 %v138, 4294901760
    %140 = vmatpush1.msra.mxu0 %v139
    %141 = vmatprep.subr.mxu0 0.0
    %v142 = vand.u32 %v18, 4294901760
    %v143 = vsub.f32 %v18, %v142
    %v144 = vand.u32 %v143, 4294901760
    %v145 = vsub.f32 %v143, %v144
    %v146 = vand.u32 %v145, 4294901760
    %147 = vmatpush1.msra.mxu0 %v146
    %148 = vmatprep.subr.mxu0 0.0
    %v149 = vand.u32 %v17, 4294901760
    %v150 = vsub.f32 %v17, %v149
    %v151 = vand.u32 %v150, 4294901760
    %v152 = vsub.f32 %v150, %v151
    %v153 = vand.u32 %v152, 4294901760
    %154 = vmatpush1.msra.mxu0 %v153
    %155 = vmatprep.subr.mxu0 0.0
    %v156 = vand.u32 %v16, 4294901760
    %v157 = vsub.f32 %v16, %v156
    %v158 = vand.u32 %v157, 4294901760
    %v159 = vsub.f32 %v157, %v158
    %v160 = vand.u32 %v159, 4294901760
    %161 = vmatpush1.msra.mxu0 %v160
    %162 = vmatprep.subr.mxu0 0.0
    %163 = vmatpush2.msra.mxu0 0.0
    %164 = vmatprep.subr.mxu0 0.0
    %165 = vmatpush2.msra.mxu0 0.0
    %166 = vmatprep.subr.mxu0 0.0
    %167 = vmatpush2.msra.mxu0 0.0
    %168 = vmatprep.subr.mxu0 0.0
    %169 = vmatpush2.msra.mxu0 0.0
    %170 = vmatprep.subr.mxu0 0.0
    %171 = vmatpush2.msra.mxu0 0.0
    %172 = vmatprep.subr.mxu0 0.0
    %173 = vmatpush2.msra.mxu0 0.0
    %174 = vmatprep.subr.mxu0 0.0
    %175 = vmatpush2.msra.mxu0 0.0
    %176 = vmatprep.subr.mxu0 0.0
    %177 = vmatpush2.msra.mxu0 0.0
    %178 = vmatprep.subr.mxu0 0.0
    %179 = vmatpush2.msra.mxu0 0.0
    %180 = vmatprep.subr.mxu0 0.0
    %181 = vmatpush2.msra.mxu0 0.0
    %182 = vmatprep.subr.mxu0 0.0
    %183 = vmatpush2.msra.mxu0 0.0
    %184 = vmatprep.subr.mxu0 0.0
    %185 = vmatpush2.msra.mxu0 0.0
    %186 = vmatprep.subr.mxu0 0.0
    %187 = vmatpush2.msra.mxu0 0.0
    %188 = vmatprep.subr.mxu0 0.0
    %189 = vmatpush2.msra.mxu0 0.0
    %190 = vmatprep.subr.mxu0 0.0
    %191 = vmatpush2.msra.mxu0 0.0
    %192 = vmatprep.subr.mxu0 0.0
    %193 = vmatpush2.msra.mxu0 0.0
    %194 = vmatprep.mubr.f32.mxu0 0.0
    %v195 = vand.u32 %v29, 4294901760
    %196 = vmatmul.mubr.f32.gmra.mxu0 %v195
    %v197 = vpop.f32.mrf.mxu0
    %v198 = vadd.f32 %v107, %v197
    %v199 = vpop.f32.mrf.mxu0
    %200 = vdwg.mxu0
    %201 = vmatprep.subr.mxu0 0.0
    %202 = vmatpush1.msra.mxu0 0.0
    %203 = vmatprep.subr.mxu0 0.0
    %204 = vmatpush1.msra.mxu0 0.0
    %205 = vmatprep.subr.mxu0 0.0
    %206 = vmatpush1.msra.mxu0 0.0
    %207 = vmatprep.subr.mxu0 0.0
    %208 = vmatpush1.msra.mxu0 0.0
    %209 = vmatprep.subr.mxu0 0.0
    %210 = vmatpush1.msra.mxu0 0.0
    %211 = vmatprep.subr.mxu0 0.0
    %212 = vmatpush1.msra.mxu0 0.0
    %213 = vmatprep.subr.mxu0 0.0
    %214 = vmatpush1.msra.mxu0 0.0
    %215 = vmatprep.subr.mxu0 0.0
    %216 = vmatpush1.msra.mxu0 0.0
    %217 = vmatprep.subr.mxu0 0.0
    %218 = vmatpush1.msra.mxu0 0.0
    %219 = vmatprep.subr.mxu0 0.0
    %220 = vmatpush1.msra.mxu0 0.0
    %221 = vmatprep.subr.mxu0 0.0
    %222 = vmatpush1.msra.mxu0 0.0
    %223 = vmatprep.subr.mxu0 0.0
    %224 = vmatpush1.msra.mxu0 0.0
    %225 = vmatprep.subr.mxu0 0.0
    %v226 = vand.u32 %v19, 4294901760
    %v227 = vsub.f32 %v19, %v226
    %228 = vmatpush1.msra.mxu0 %v227
    %229 = vmatprep.subr.mxu0 0.0
    %v230 = vand.u32 %v18, 4294901760
    %v231 = vsub.f32 %v18, %v230
    %232 = vmatpush1.msra.mxu0 %v231
    %233 = vmatprep.subr.mxu0 0.0
    %v234 = vand.u32 %v17, 4294901760
    %v235 = vsub.f32 %v17, %v234
    %236 = vmatpush1.msra.mxu0 %v235
    %237 = vmatprep.subr.mxu0 0.0
    %v238 = vand.u32 %v16, 4294901760
    %v239 = vsub.f32 %v16, %v238
    %240 = vmatpush1.msra.mxu0 %v239
    %241 = vmatprep.subr.mxu0 0.0
    %242 = vmatpush2.msra.mxu0 0.0
    %243 = vmatprep.subr.mxu0 0.0
    %244 = vmatpush2.msra.mxu0 0.0
    %245 = vmatprep.subr.mxu0 0.0
    %246 = vmatpush2.msra.mxu0 0.0
    %247 = vmatprep.subr.mxu0 0.0
    %248 = vmatpush2.msra.mxu0 0.0
    %249 = vmatprep.subr.mxu0 0.0
    %250 = vmatpush2.msra.mxu0 0.0
    %251 = vmatprep.subr.mxu0 0.0
    %252 = vmatpush2.msra.mxu0 0.0
    %253 = vmatprep.subr.mxu0 0.0
    %254 = vmatpush2.msra.mxu0 0.0
    %255 = vmatprep.subr.mxu0 0.0
    %256 = vmatpush2.msra.mxu0 0.0
    %257 = vmatprep.subr.mxu0 0.0
    %258 = vmatpush2.msra.mxu0 0.0
    %259 = vmatprep.subr.mxu0 0.0
    %260 = vmatpush2.msra.mxu0 0.0
    %261 = vmatprep.subr.mxu0 0.0
    %262 = vmatpush2.msra.mxu0 0.0
    %263 = vmatprep.subr.mxu0 0.0
    %264 = vmatpush2.msra.mxu0 0.0
    %265 = vmatprep.subr.mxu0 0.0
    %266 = vmatpush2.msra.mxu0 0.0
    %267 = vmatprep.subr.mxu0 0.0
    %268 = vmatpush2.msra.mxu0 0.0
    %269 = vmatprep.subr.mxu0 0.0
    %270 = vmatpush2.msra.mxu0 0.0
    %271 = vmatprep.subr.mxu0 0.0
    %272 = vmatpush2.msra.mxu0 0.0
    %273 = vmatprep.mubr.f32.mxu0 0.0
    %v274 = vand.u32 %v29, 4294901760
    %v275 = vsub.f32 %v29, %v274
    %276 = vmatmul.mubr.f32.gmra.mxu0 %v275
    %v277 = vpop.f32.mrf.mxu0
    %v278 = vadd.f32 %v198, %v277
    %v279 = vpop.f32.mrf.mxu0
    %280 = vdwg.mxu0
    %281 = vmatprep.subr.mxu0 0.0
    %282 = vmatpush1.msra.mxu0 0.0
    %283 = vmatprep.subr.mxu0 0.0
    %284 = vmatpush1.msra.mxu0 0.0
    %285 = vmatprep.subr.mxu0 0.0
    %286 = vmatpush1.msra.mxu0 0.0
    %287 = vmatprep.subr.mxu0 0.0
    %288 = vmatpush1.msra.mxu0 0.0
    %289 = vmatprep.subr.mxu0 0.0
    %290 = vmatpush1.msra.mxu0 0.0
    %291 = vmatprep.subr.mxu0 0.0
    %292 = vmatpush1.msra.mxu0 0.0
    %293 = vmatprep.subr.mxu0 0.0
    %294 = vmatpush1.msra.mxu0 0.0
    %295 = vmatprep.subr.mxu0 0.0
    %296 = vmatpush1.msra.mxu0 0.0
    %297 = vmatprep.subr.mxu0 0.0
    %298 = vmatpush1.msra.mxu0 0.0
    %299 = vmatprep.subr.mxu0 0.0
    %300 = vmatpush1.msra.mxu0 0.0
    %301 = vmatprep.subr.mxu0 0.0
    %302 = vmatpush1.msra.mxu0 0.0
    %303 = vmatprep.subr.mxu0 0.0
    %304 = vmatpush1.msra.mxu0 0.0
    %305 = vmatprep.subr.mxu0 0.0
    %v306 = vand.u32 %v19, 4294901760
    %307 = vmatpush1.msra.mxu0 %v306
    %308 = vmatprep.subr.mxu0 0.0
    %v309 = vand.u32 %v18, 4294901760
    %310 = vmatpush1.msra.mxu0 %v309
    %311 = vmatprep.subr.mxu0 0.0
    %v312 = vand.u32 %v17, 4294901760
    %313 = vmatpush1.msra.mxu0 %v312
    %314 = vmatprep.subr.mxu0 0.0
    %v315 = vand.u32 %v16, 4294901760
    %316 = vmatpush1.msra.mxu0 %v315
    %317 = vmatprep.subr.mxu0 0.0
    %318 = vmatpush2.msra.mxu0 0.0
    %319 = vmatprep.subr.mxu0 0.0
    %320 = vmatpush2.msra.mxu0 0.0
    %321 = vmatprep.subr.mxu0 0.0
    %322 = vmatpush2.msra.mxu0 0.0
    %323 = vmatprep.subr.mxu0 0.0
    %324 = vmatpush2.msra.mxu0 0.0
    %325 = vmatprep.subr.mxu0 0.0
    %326 = vmatpush2.msra.mxu0 0.0
    %327 = vmatprep.subr.mxu0 0.0
    %328 = vmatpush2.msra.mxu0 0.0
    %329 = vmatprep.subr.mxu0 0.0
    %330 = vmatpush2.msra.mxu0 0.0
    %331 = vmatprep.subr.mxu0 0.0
    %332 = vmatpush2.msra.mxu0 0.0
    %333 = vmatprep.subr.mxu0 0.0
    %334 = vmatpush2.msra.mxu0 0.0
    %335 = vmatprep.subr.mxu0 0.0
    %336 = vmatpush2.msra.mxu0 0.0
    %337 = vmatprep.subr.mxu0 0.0
    %338 = vmatpush2.msra.mxu0 0.0
    %339 = vmatprep.subr.mxu0 0.0
    %340 = vmatpush2.msra.mxu0 0.0
    %341 = vmatprep.subr.mxu0 0.0
    %342 = vmatpush2.msra.mxu0 0.0
    %343 = vmatprep.subr.mxu0 0.0
    %344 = vmatpush2.msra.mxu0 0.0
    %345 = vmatprep.subr.mxu0 0.0
    %346 = vmatpush2.msra.mxu0 0.0
    %347 = vmatprep.subr.mxu0 0.0
    %348 = vmatpush2.msra.mxu0 0.0
    %349 = vmatprep.mubr.f32.mxu0 0.0
    %v350 = vand.u32 %v29, 4294901760
    %v351 = vsub.f32 %v29, %v350
    %v352 = vand.u32 %v351, 4294901760
    %353 = vmatmul.mubr.f32.gmra.mxu0 %v352
    %v354 = vpop.f32.mrf.mxu0
    %v355 = vadd.f32 %v278, %v354
    %v356 = vpop.f32.mrf.mxu0
    %357 = vdwg.mxu0
    %358 = vmatprep.subr.mxu0 0.0
    %359 = vmatpush1.msra.mxu0 0.0
    %360 = vmatprep.subr.mxu0 0.0
    %361 = vmatpush1.msra.mxu0 0.0
    %362 = vmatprep.subr.mxu0 0.0
    %363 = vmatpush1.msra.mxu0 0.0
    %364 = vmatprep.subr.mxu0 0.0
    %365 = vmatpush1.msra.mxu0 0.0
    %366 = vmatprep.subr.mxu0 0.0
    %367 = vmatpush1.msra.mxu0 0.0
    %368 = vmatprep.subr.mxu0 0.0
    %369 = vmatpush1.msra.mxu0 0.0
    %370 = vmatprep.subr.mxu0 0.0
    %371 = vmatpush1.msra.mxu0 0.0
    %372 = vmatprep.subr.mxu0 0.0
    %373 = vmatpush1.msra.mxu0 0.0
    %374 = vmatprep.subr.mxu0 0.0
    %375 = vmatpush1.msra.mxu0 0.0
    %376 = vmatprep.subr.mxu0 0.0
    %377 = vmatpush1.msra.mxu0 0.0
    %378 = vmatprep.subr.mxu0 0.0
    %379 = vmatpush1.msra.mxu0 0.0
    %380 = vmatprep.subr.mxu0 0.0
    %381 = vmatpush1.msra.mxu0 0.0
    %382 = vmatprep.subr.mxu0 0.0
    %v383 = vand.u32 %v19, 4294901760
    %v384 = vsub.f32 %v19, %v383
    %v385 = vand.u32 %v384, 4294901760
    %386 = vmatpush1.msra.mxu0 %v385
    %387 = vmatprep.subr.mxu0 0.0
    %v388 = vand.u32 %v18, 4294901760
    %v389 = vsub.f32 %v18, %v388
    %v390 = vand.u32 %v389, 4294901760
    %391 = vmatpush1.msra.mxu0 %v390
    %392 = vmatprep.subr.mxu0 0.0
    %v393 = vand.u32 %v17, 4294901760
    %v394 = vsub.f32 %v17, %v393
    %v395 = vand.u32 %v394, 4294901760
    %396 = vmatpush1.msra.mxu0 %v395
    %397 = vmatprep.subr.mxu0 0.0
    %v398 = vand.u32 %v16, 4294901760
    %v399 = vsub.f32 %v16, %v398
    %v400 = vand.u32 %v399, 4294901760
    %401 = vmatpush1.msra.mxu0 %v400
    %402 = vmatprep.subr.mxu0 0.0
    %403 = vmatpush2.msra.mxu0 0.0
    %404 = vmatprep.subr.mxu0 0.0
    %405 = vmatpush2.msra.mxu0 0.0
    %406 = vmatprep.subr.mxu0 0.0
    %407 = vmatpush2.msra.mxu0 0.0
    %408 = vmatprep.subr.mxu0 0.0
    %409 = vmatpush2.msra.mxu0 0.0
    %410 = vmatprep.subr.mxu0 0.0
    %411 = vmatpush2.msra.mxu0 0.0
    %412 = vmatprep.subr.mxu0 0.0
    %413 = vmatpush2.msra.mxu0 0.0
    %414 = vmatprep.subr.mxu0 0.0
    %415 = vmatpush2.msra.mxu0 0.0
    %416 = vmatprep.subr.mxu0 0.0
    %417 = vmatpush2.msra.mxu0 0.0
    %418 = vmatprep.subr.mxu0 0.0
    %419 = vmatpush2.msra.mxu0 0.0
    %420 = vmatprep.subr.mxu0 0.0
    %421 = vmatpush2.msra.mxu0 0.0
    %422 = vmatprep.subr.mxu0 0.0
    %423 = vmatpush2.msra.mxu0 0.0
    %424 = vmatprep.subr.mxu0 0.0
    %425 = vmatpush2.msra.mxu0 0.0
    %426 = vmatprep.subr.mxu0 0.0
    %427 = vmatpush2.msra.mxu0 0.0
    %428 = vmatprep.subr.mxu0 0.0
    %429 = vmatpush2.msra.mxu0 0.0
    %430 = vmatprep.subr.mxu0 0.0
    %431 = vmatpush2.msra.mxu0 0.0
    %432 = vmatprep.subr.mxu0 0.0
    %433 = vmatpush2.msra.mxu0 0.0
    %434 = vmatprep.mubr.f32.mxu0 0.0
    %v435 = vand.u32 %v29, 4294901760
    %436 = vmatmul.mubr.f32.gmra.mxu0 %v435
    %v437 = vpop.f32.mrf.mxu0
    %v438 = vadd.f32 %v355, %v437
    %v439 = vpop.f32.mrf.mxu0
    %440 = vdwg.mxu0
    %441 = vmatprep.subr.mxu0 0.0
    %442 = vmatpush1.msra.mxu0 0.0
    %443 = vmatprep.subr.mxu0 0.0
    %444 = vmatpush1.msra.mxu0 0.0
    %445 = vmatprep.subr.mxu0 0.0
    %446 = vmatpush1.msra.mxu0 0.0
    %447 = vmatprep.subr.mxu0 0.0
    %448 = vmatpush1.msra.mxu0 0.0
    %449 = vmatprep.subr.mxu0 0.0
    %450 = vmatpush1.msra.mxu0 0.0
    %451 = vmatprep.subr.mxu0 0.0
    %452 = vmatpush1.msra.mxu0 0.0
    %453 = vmatprep.subr.mxu0 0.0
    %454 = vmatpush1.msra.mxu0 0.0
    %455 = vmatprep.subr.mxu0 0.0
    %456 = vmatpush1.msra.mxu0 0.0
    %457 = vmatprep.subr.mxu0 0.0
    %458 = vmatpush1.msra.mxu0 0.0
    %459 = vmatprep.subr.mxu0 0.0
    %460 = vmatpush1.msra.mxu0 0.0
    %461 = vmatprep.subr.mxu0 0.0
    %462 = vmatpush1.msra.mxu0 0.0
    %463 = vmatprep.subr.mxu0 0.0
    %464 = vmatpush1.msra.mxu0 0.0
    %465 = vmatprep.subr.mxu0 0.0
    %v466 = vand.u32 %v19, 4294901760
    %467 = vmatpush1.msra.mxu0 %v466
    %468 = vmatprep.subr.mxu0 0.0
    %v469 = vand.u32 %v18, 4294901760
    %470 = vmatpush1.msra.mxu0 %v469
    %471 = vmatprep.subr.mxu0 0.0
    %v472 = vand.u32 %v17, 4294901760
    %473 = vmatpush1.msra.mxu0 %v472
    %474 = vmatprep.subr.mxu0 0.0
    %v475 = vand.u32 %v16, 4294901760
    %476 = vmatpush1.msra.mxu0 %v475
    %477 = vmatprep.subr.mxu0 0.0
    %478 = vmatpush2.msra.mxu0 0.0
    %479 = vmatprep.subr.mxu0 0.0
    %480 = vmatpush2.msra.mxu0 0.0
    %481 = vmatprep.subr.mxu0 0.0
    %482 = vmatpush2.msra.mxu0 0.0
    %483 = vmatprep.subr.mxu0 0.0
    %484 = vmatpush2.msra.mxu0 0.0
    %485 = vmatprep.subr.mxu0 0.0
    %486 = vmatpush2.msra.mxu0 0.0
    %487 = vmatprep.subr.mxu0 0.0
    %488 = vmatpush2.msra.mxu0 0.0
    %489 = vmatprep.subr.mxu0 0.0
    %490 = vmatpush2.msra.mxu0 0.0
    %491 = vmatprep.subr.mxu0 0.0
    %492 = vmatpush2.msra.mxu0 0.0
    %493 = vmatprep.subr.mxu0 0.0
    %494 = vmatpush2.msra.mxu0 0.0
    %495 = vmatprep.subr.mxu0 0.0
    %496 = vmatpush2.msra.mxu0 0.0
    %497 = vmatprep.subr.mxu0 0.0
    %498 = vmatpush2.msra.mxu0 0.0
    %499 = vmatprep.subr.mxu0 0.0
    %500 = vmatpush2.msra.mxu0 0.0
    %501 = vmatprep.subr.mxu0 0.0
    %502 = vmatpush2.msra.mxu0 0.0
    %503 = vmatprep.subr.mxu0 0.0
    %504 = vmatpush2.msra.mxu0 0.0
    %505 = vmatprep.subr.mxu0 0.0
    %506 = vmatpush2.msra.mxu0 0.0
    %507 = vmatprep.subr.mxu0 0.0
    %508 = vmatpush2.msra.mxu0 0.0
    %509 = vmatprep.mubr.f32.mxu0 0.0
    %v510 = vand.u32 %v29, 4294901760
    %511 = vmatmul.mubr.f32.gmra.mxu0 %v510
    %v512 = vpop.f32.mrf.mxu0
    %v513 = vadd.f32 %v438, %v512
    %v514 = vpop.f32.mrf.mxu0
    %515 = vdwg.mxu0
    %v516 = vxor.u32 %v513, 2147483648
    %v517 = vmul.f32 %v516, 1.442695
    %v518 = vpow.pop %v517
    %v519 = vadd.f32 %v518, 1.0
    %v520 = vrcp.pop %v519
    %v521 = vmul.f32 1.0, %v520
    %vm522 = vcmask 130048
    %523 = vst.msk [vmem:[#allocation2] sm:$0xff] %vm522, %v521
    // Predicated region
    $region14: #{linearlayer_att_forward.1} parent=1 // pred_check
      _
    $region15: #{linearlayer_att_forward.1} parent=1 // pred_check_branch
      %525 = sbr.rel (0) target = $region17
    $region16: #{linearlayer_att_forward.1} parent=1 // pred_region
      %s527 = ssub.s32 128, 128
      %528 = vsyncadd [#allocation3], %s527
      %s530 = sshll.u32 [#allocation2], 4
      %s531 = int_to_ptr.vmem [resolvable:$true] %s530
      %533 = dma.vmem_to_hbm [thread:$0]  %s531, 128, %s3, [#allocation3]
    $region17: #{linearlayer_att_forward.1} parent=1 // pred_fallthru
      _
    // Predicated region
    $region18: #{linearlayer_att_forward.1} parent=1 // pred_check
      _
    $region19: #{linearlayer_att_forward.1} parent=1 // pred_check_branch
      %535 = sbr.rel (0) target = $region21
    $region20: #{linearlayer_att_forward.1} parent=1 // pred_region
      %536 = dma.done [#allocation3], 128
    $region21: #{linearlayer_att_forward.1} parent=1 // pred_fallthru
      _
    %537 = vsyncpa [#allocation3], 1

</llo_original>
